<compile_context>
chip_gen: v7x
topology: tpu7x:2x2x1
jax: 0.10.0
libtpu: 0.0.40
codegen_flags: <defaults>
</compile_context>

<pallas_src>
import math

import numpy as np
import jax
import jax.numpy as jnp
from jax.experimental import pallas as pl
from jax.experimental.pallas import tpu as pltpu


def _round_up(n, m):
    return ((n + m - 1) // m) * m


def _pad2(a, rows, cols):
    r, c = a.shape
    if r == rows and c == cols:
        return a
    return jnp.pad(a, ((0, rows - r), (0, cols - c)))


def _vmem_capacity_bytes():
    try:
        return int(pltpu.get_tpu_info().vmem_capacity_bytes)
    except Exception:
        return 64 << 20  # conservative fallback: v7x per-TensorCore VMEM


def ae_category_kernel(x_ref,
                       w1_ref, b1_ref,   # Encoder layer 1: font -> hidden
                       w2_ref, b2_ref,   # Encoder layer 2: hidden -> z
                       w3_ref, b3_ref,   # Decoder layer 1: z -> hidden
                       w4_ref, b4_ref,   # Decoder layer 2: hidden -> font
                       xhat_ref, z_ref):
    # ---- Encoder ----
    x = x_ref[...]                                             # already bf16
    h1 = jnp.dot(x, w1_ref[...],
                 preferred_element_type=jnp.float32) + b1_ref[...]
    h1 = jnp.maximum(h1, 0.0)                                  # ReLU (f32 VPU)
    z = jnp.dot(h1.astype(jnp.bfloat16), w2_ref[...],
                preferred_element_type=jnp.float32) + b2_ref[...]
    z_ref[...] = z.astype(z_ref.dtype)                         # lane-dense store

    # ---- Decoder ----
    h2 = jnp.dot(z.astype(jnp.bfloat16), w3_ref[...],
                 preferred_element_type=jnp.float32) + b3_ref[...]
    h2 = jnp.maximum(h2, 0.0)                                  # ReLU
    logits = jnp.dot(h2.astype(jnp.bfloat16), w4_ref[...],
                     preferred_element_type=jnp.float32) + b4_ref[...]
    # sigmoid in f32 (v5e-safe EUP), narrowed to out dtype on store.
    xhat_ref[...] = jax.nn.sigmoid(logits).astype(xhat_ref.dtype)


def ae_category_forward(x_font, params, *, tile_b=512, out_dtype=jnp.bfloat16):
    """Forward pass of AE_category.  Returns (x_hat, z_latent).

    x_hat is produced in `out_dtype` (bf16 by default: ~3 significant digits,
    halves the writeback traffic).  Pass out_dtype=jnp.float32 if the
    downstream loss needs full precision.
    """
    origin_shape = x_font.shape
    B = origin_shape[0]
    x = x_font.reshape(B, -1)                     # == torch .view(B, -1)
    D = x.shape[1]

    w1, b1, w2, b2, w3, b3, w4, b4 = params
    H = w1.shape[1]
    Z = w2.shape[1]

    # Lane (128) aligned padded feature sizes; zero padding is exact
    # (padded h columns relu to 0 and padded weight rows are 0).
    Dp = _round_up(D, 128)
    Hp = _round_up(H, 128)
    Zp = _round_up(Z, 128)

    bf = jnp.bfloat16
    out_size = int(np.dtype(out_dtype).itemsize)

    # ---- VMEM budget / batch-tile selection --------------------------------
    vmem_cap = _vmem_capacity_bytes()
    w_bytes = 2 * (Dp * Hp + Hp * Zp + Zp * Hp + Hp * Dp)       # bf16 weights
    b_bytes = 4 * (Hp + Zp + Hp + Dp)                           # f32 biases
    resident = 2 * (w_bytes + b_bytes)       # default double-buffered pipeline
    # streamed bytes per batch row (x in bf16, x_hat, z), double-buffered,
    # plus f32 intermediates (h1 / logits / z) held once during compute.
    stream_row = 2 * (Dp * 2 + Dp * out_size + Zp * 4)
    compute_row = 4 * (Hp + Dp + Zp)
    budget = int(0.8 * vmem_cap)
    avail = max(budget - resident, 8 * (stream_row + compute_row))
    tile_cap = max(8, (avail // (stream_row + compute_row)) // 8 * 8)

    B8 = _round_up(B, 8)
    max_tile = min(_round_up(tile_b, 8), tile_cap)
    if B8 <= 8:
        TB = B8
    else:
        # >=2 grid steps so v7x's 2 TensorCores both get work on the
        # "parallel" batch axis, tiles as large as possible otherwise, and
        # TB derived from ceil(B8/steps) to minimize batch-padding waste.
        steps = max(2, math.ceil(B8 / max_tile))
        TB = min(_round_up(math.ceil(B8 / steps), 8), max_tile)
    Bp = _round_up(B8, TB)

    # ---- Pad & cast operands (f32->bf16 fuses with the padding copy) -------
    xp = _pad2(x.astype(bf), Bp, Dp)
    w1p = _pad2(w1, Dp, Hp).astype(bf); b1p = _pad2(b1, 1, Hp).astype(jnp.float32)
    w2p = _pad2(w2, Hp, Zp).astype(bf); b2p = _pad2(b2, 1, Zp).astype(jnp.float32)
    w3p = _pad2(w3, Zp, Hp).astype(bf); b3p = _pad2(b3, 1, Hp).astype(jnp.float32)
    w4p = _pad2(w4, Hp, Dp).astype(bf); b4p = _pad2(b4, 1, Dp).astype(jnp.float32)

    grid = (Bp // TB,)
    row = lambda i: (i, 0)    # streamed over batch tiles
    cst = lambda i: (0, 0)    # VMEM-resident across all grid steps

    footprint = resident + TB * (stream_row + compute_row)
    vmem_limit = int(min(0.9 * vmem_cap, footprint + (16 << 20)))
    vmem_limit = min(max(vmem_limit, 32 << 20), int(0.9 * vmem_cap))

    flops = 2 * Bp * (Dp * Hp + Hp * Zp + Zp * Hp + Hp * Dp)
    bytes_accessed = (Bp * Dp * 2                     # x in (bf16)
                      + w_bytes + b_bytes             # weights/biases, once
                      + Bp * Dp * out_size            # x_hat out
                      + Bp * Zp * 4)                  # z out (f32)
    cost = pl.CostEstimate(flops=flops, transcendentals=Bp * Dp,
                           bytes_accessed=bytes_accessed)

    xhat, z = pl.pallas_call(
        ae_category_kernel,
        out_shape=(jax.ShapeDtypeStruct((Bp, Dp), out_dtype),
                   jax.ShapeDtypeStruct((Bp, Zp), jnp.float32)),
        grid=grid,
        in_specs=[
            pl.BlockSpec((TB, Dp), row),
            pl.BlockSpec((Dp, Hp), cst), pl.BlockSpec((1, Hp), cst),
            pl.BlockSpec((Hp, Zp), cst), pl.BlockSpec((1, Zp), cst),
            pl.BlockSpec((Zp, Hp), cst), pl.BlockSpec((1, Hp), cst),
            pl.BlockSpec((Hp, Dp), cst), pl.BlockSpec((1, Dp), cst),
        ],
        out_specs=(pl.BlockSpec((TB, Dp), row),
                   pl.BlockSpec((TB, Zp), row)),
        compiler_params=pltpu.CompilerParams(
            dimension_semantics=("parallel",),   # megacore-shard batch on v7x
            vmem_limit_bytes=vmem_limit),
        cost_estimate=cost,
    )(xp, w1p, b1p, w2p, b2p, w3p, b3p, w4p, b4p)

    x_hat = xhat[:B, :D].reshape(origin_shape)
    z_latent = z[:B, :Z]
    return x_hat, z_latent


def init_params(key, font_size, hidden_size, z_size):
    """Deterministic synthetic init (uniform +/- 1/sqrt(fan_in), like torch Linear)."""
    ks = jax.random.split(key, 8)

    def lin(kw, kb, fan_in, fan_out):
        bound = 1.0 / jnp.sqrt(jnp.float32(fan_in))
        w = jax.random.uniform(kw, (fan_in, fan_out), jnp.float32, -bound, bound)
        b = jax.random.uniform(kb, (1, fan_out), jnp.float32, -bound, bound)
        return w, b

    w1, b1 = lin(ks[0], ks[1], font_size, hidden_size)   # encoder L1
    w2, b2 = lin(ks[2], ks[3], hidden_size, z_size)      # encoder L2
    w3, b3 = lin(ks[4], ks[5], z_size, hidden_size)      # decoder L1
    w4, b4 = lin(ks[6], ks[7], hidden_size, font_size)   # decoder L2
    return (w1, b1, w2, b2, w3, b3, w4, b4)


if __name__ == "__main__":
    # Small shapes consistent with the module: font images 16x16 (font_size=256),
    # z_size=64, hidden=128, batch=2.
    B, C, Hs, Ws = 2, 1, 16, 16
    font_size = C * Hs * Ws
    hidden_size = 128
    z_size = 64

    key = jax.random.PRNGKey(0)
    k_x, k_p = jax.random.split(key)
    x_font = jax.random.uniform(k_x, (B, C, Hs, Ws), jnp.float32)
    params = init_params(k_p, font_size, hidden_size, z_size)

    x_hat, z_latent = ae_category_forward(x_font, params)
    jax.block_until_ready((x_hat, z_latent))

    assert x_hat.shape == x_font.shape
    assert z_latent.shape == (B, z_size)

    # Pure-JAX reference replicating the kernel's bf16-matmul / f32-accumulate
    # recipe (weights & activations bf16 at matmul inputs, f32 accumulation).
    w1, b1, w2, b2, w3, b3, w4, b4 = params
    bf = jnp.bfloat16
    xf = x_font.reshape(B, -1).astype(bf)
    h1 = jnp.maximum(
        jnp.dot(xf, w1.astype(bf), preferred_element_type=jnp.float32) + b1, 0.0)
    z_ref = jnp.dot(h1.astype(bf), w2.astype(bf),
                    preferred_element_type=jnp.float32) + b2
    h2 = jnp.maximum(
        jnp.dot(z_ref.astype(bf), w3.astype(bf),
                preferred_element_type=jnp.float32) + b3, 0.0)
    xh_ref = jax.nn.sigmoid(
        jnp.dot(h2.astype(bf), w4.astype(bf),
                preferred_element_type=jnp.float32) + b4).reshape(x_font.shape)

    # x_hat is bf16 (per perf feedback): compare in f32 with bf16-level tolerance.
    assert jnp.allclose(x_hat.astype(jnp.float32), xh_ref, atol=1e-2, rtol=1e-2)
    assert jnp.allclose(z_latent, z_ref, atol=5e-3, rtol=5e-3)

    print("KERNEL_OK")
</pallas_src>

<mosaic_0001>
module attributes {stable_mosaic.version = 11 : i64} {
  func.func @ae_category_kernel(%arg0: i32, %arg1: memref<8x256xbf16, #tpu.memory_space<vmem>>, %arg2: memref<256x128xbf16, #tpu.memory_space<vmem>>, %arg3: memref<1x128xf32, #tpu.memory_space<vmem>>, %arg4: memref<128x128xbf16, #tpu.memory_space<vmem>>, %arg5: memref<1x128xf32, #tpu.memory_space<vmem>>, %arg6: memref<128x128xbf16, #tpu.memory_space<vmem>>, %arg7: memref<1x128xf32, #tpu.memory_space<vmem>>, %arg8: memref<128x256xbf16, #tpu.memory_space<vmem>>, %arg9: memref<1x256xf32, #tpu.memory_space<vmem>>, %arg10: memref<8x256xbf16, #tpu.memory_space<vmem>>, %arg11: memref<8x128xf32, #tpu.memory_space<vmem>>) attributes {dimension_semantics = [#tpu.dimension_semantics<parallel>], iteration_bounds = array<i64: 1>, scalar_prefetch = 0 : i64, scratch_operands = 0 : i64, tpu.core_type = #tpu.core_type<tc>, window_params = [{transform_indices = @transform_0, window_bounds = array<i64: 8, 256>}, {pipeline_mode = #tpu.pipeline_mode<synchronous>, transform_indices = @transform_1, window_bounds = array<i64: 256, 128>}, {pipeline_mode = #tpu.pipeline_mode<synchronous>, transform_indices = @transform_2, window_bounds = array<i64: 1, 128>}, {pipeline_mode = #tpu.pipeline_mode<synchronous>, transform_indices = @transform_3, window_bounds = array<i64: 128, 128>}, {pipeline_mode = #tpu.pipeline_mode<synchronous>, transform_indices = @transform_4, window_bounds = array<i64: 1, 128>}, {pipeline_mode = #tpu.pipeline_mode<synchronous>, transform_indices = @transform_5, window_bounds = array<i64: 128, 128>}, {pipeline_mode = #tpu.pipeline_mode<synchronous>, transform_indices = @transform_6, window_bounds = array<i64: 1, 128>}, {pipeline_mode = #tpu.pipeline_mode<synchronous>, transform_indices = @transform_7, window_bounds = array<i64: 128, 256>}, {pipeline_mode = #tpu.pipeline_mode<synchronous>, transform_indices = @transform_8, window_bounds = array<i64: 1, 256>}, {transform_indices = @transform_9, window_bounds = array<i64: 8, 256>}, {transform_indices = @transform_10, window_bounds = array<i64: 8, 128>}]} {
    %c0 = arith.constant 0 : index
    %c0_0 = arith.constant 0 : index
    %0 = vector.load %arg1[%c0, %c0_0] : memref<8x256xbf16, #tpu.memory_space<vmem>>, vector<8x256xbf16>
    %c0_1 = arith.constant 0 : index
    %c0_2 = arith.constant 0 : index
    %1 = vector.load %arg2[%c0_1, %c0_2] : memref<256x128xbf16, #tpu.memory_space<vmem>>, vector<256x128xbf16>
    %cst = arith.constant dense<0.000000e+00> : vector<8x128xf32>
    %2 = tpu.matmul %0, %1, %cst {dimension_numbers = #tpu.dot_dimension_numbers<[1], [0], [0], [1], [0, 0, 1, 1], [], []>} : vector<8x256xbf16>, vector<256x128xbf16>, vector<8x128xf32> -> vector<8x128xf32>
    %c0_3 = arith.constant 0 : index
    %c0_4 = arith.constant 0 : index
    %3 = vector.load %arg3[%c0_3, %c0_4] : memref<1x128xf32, #tpu.memory_space<vmem>>, vector<1x128xf32>
    %4 = vector.broadcast %3 : vector<1x128xf32> to vector<8x128xf32>
    %5 = arith.addf %2, %4 : vector<8x128xf32>
    %cst_5 = arith.constant 0.000000e+00 : f32
    %6 = vector.broadcast %cst_5 : f32 to vector<8x128xf32>
    %7 = arith.maximumf %5, %6 : vector<8x128xf32>
    %8 = arith.truncf %7 : vector<8x128xf32> to vector<8x128xbf16>
    %c0_6 = arith.constant 0 : index
    %c0_7 = arith.constant 0 : index
    %9 = vector.load %arg4[%c0_6, %c0_7] : memref<128x128xbf16, #tpu.memory_space<vmem>>, vector<128x128xbf16>
    %cst_8 = arith.constant dense<0.000000e+00> : vector<8x128xf32>
    %10 = tpu.matmul %8, %9, %cst_8 {dimension_numbers = #tpu.dot_dimension_numbers<[1], [0], [0], [1], [0, 0, 1, 1], [], []>} : vector<8x128xbf16>, vector<128x128xbf16>, vector<8x128xf32> -> vector<8x128xf32>
    %c0_9 = arith.constant 0 : index
    %c0_10 = arith.constant 0 : index
    %11 = vector.load %arg5[%c0_9, %c0_10] : memref<1x128xf32, #tpu.memory_space<vmem>>, vector<1x128xf32>
    %12 = vector.broadcast %11 : vector<1x128xf32> to vector<8x128xf32>
    %13 = arith.addf %10, %12 : vector<8x128xf32>
    %c0_11 = arith.constant 0 : index
    %c0_12 = arith.constant 0 : index
    %14 = vector.load %arg11[%c0_11, %c0_12] : memref<8x128xf32, #tpu.memory_space<vmem>>, vector<8x128xf32>
    tpu.vector_store %arg11[%c0_11, %c0_12], %13 {strides = array<i32>} : memref<8x128xf32, #tpu.memory_space<vmem>>, vector<8x128xf32>,
    %15 = arith.truncf %13 : vector<8x128xf32> to vector<8x128xbf16>
    %c0_13 = arith.constant 0 : index
    %c0_14 = arith.constant 0 : index
    %16 = vector.load %arg6[%c0_13, %c0_14] : memref<128x128xbf16, #tpu.memory_space<vmem>>, vector<128x128xbf16>
    %cst_15 = arith.constant dense<0.000000e+00> : vector<8x128xf32>
    %17 = tpu.matmul %15, %16, %cst_15 {dimension_numbers = #tpu.dot_dimension_numbers<[1], [0], [0], [1], [0, 0, 1, 1], [], []>} : vector<8x128xbf16>, vector<128x128xbf16>, vector<8x128xf32> -> vector<8x128xf32>
    %c0_16 = arith.constant 0 : index
    %c0_17 = arith.constant 0 : index
    %18 = vector.load %arg7[%c0_16, %c0_17] : memref<1x128xf32, #tpu.memory_space<vmem>>, vector<1x128xf32>
    %19 = vector.broadcast %18 : vector<1x128xf32> to vector<8x128xf32>
    %20 = arith.addf %17, %19 : vector<8x128xf32>
    %cst_18 = arith.constant 0.000000e+00 : f32
    %21 = vector.broadcast %cst_18 : f32 to vector<8x128xf32>
    %22 = arith.maximumf %20, %21 : vector<8x128xf32>
    %23 = arith.truncf %22 : vector<8x128xf32> to vector<8x128xbf16>
    %c0_19 = arith.constant 0 : index
    %c0_20 = arith.constant 0 : index
    %24 = vector.load %arg8[%c0_19, %c0_20] : memref<128x256xbf16, #tpu.memory_space<vmem>>, vector<128x256xbf16>
    %cst_21 = arith.constant dense<0.000000e+00> : vector<8x256xf32>
    %25 = tpu.matmul %23, %24, %cst_21 {dimension_numbers = #tpu.dot_dimension_numbers<[1], [0], [0], [1], [0, 0, 1, 1], [], []>} : vector<8x128xbf16>, vector<128x256xbf16>, vector<8x256xf32> -> vector<8x256xf32>
    %c0_22 = arith.constant 0 : index
    %c0_23 = arith.constant 0 : index
    %26 = vector.load %arg9[%c0_22, %c0_23] : memref<1x256xf32, #tpu.memory_space<vmem>>, vector<1x256xf32>
    %27 = vector.broadcast %26 : vector<1x256xf32> to vector<8x256xf32>
    %28 = arith.addf %25, %27 : vector<8x256xf32>
    %29 = arith.negf %28 : vector<8x256xf32>
    %30 = math.exp %29 : vector<8x256xf32>
    %cst_24 = arith.constant 1.000000e+00 : f32
    %31 = vector.broadcast %cst_24 : f32 to vector<8x256xf32>
    %32 = arith.addf %31, %30 : vector<8x256xf32>
    %33 = arith.divf %31, %32 : vector<8x256xf32>
    %34 = arith.truncf %33 : vector<8x256xf32> to vector<8x256xbf16>
    %c0_25 = arith.constant 0 : index
    %c0_26 = arith.constant 0 : index
    %35 = vector.load %arg10[%c0_25, %c0_26] : memref<8x256xbf16, #tpu.memory_space<vmem>>, vector<8x256xbf16>
    tpu.vector_store %arg10[%c0_25, %c0_26], %34 {strides = array<i32>} : memref<8x256xbf16, #tpu.memory_space<vmem>>, vector<8x256xbf16>,
    return
  }
  func.func @transform_0(%arg0: i32) -> (i32, i32) {
    %c0_i32 = arith.constant 0 : i32
    %c0_i32_0 = arith.constant 0 : i32
    return %arg0, %c0_i32 : i32, i32
  }
  func.func @transform_1(%arg0: i32) -> (i32, i32) {
    %c0_i32 = arith.constant 0 : i32
    %c0_i32_0 = arith.constant 0 : i32
    %c0_i32_1 = arith.constant 0 : i32
    return %c0_i32, %c0_i32_0 : i32, i32
  }
  func.func @transform_2(%arg0: i32) -> (i32, i32) {
    %c0_i32 = arith.constant 0 : i32
    %c0_i32_0 = arith.constant 0 : i32
    %c0_i32_1 = arith.constant 0 : i32
    return %c0_i32, %c0_i32_0 : i32, i32
  }
  func.func @transform_3(%arg0: i32) -> (i32, i32) {
    %c0_i32 = arith.constant 0 : i32
    %c0_i32_0 = arith.constant 0 : i32
    %c0_i32_1 = arith.constant 0 : i32
    return %c0_i32, %c0_i32_0 : i32, i32
  }
  func.func @transform_4(%arg0: i32) -> (i32, i32) {
    %c0_i32 = arith.constant 0 : i32
    %c0_i32_0 = arith.constant 0 : i32
    %c0_i32_1 = arith.constant 0 : i32
    return %c0_i32, %c0_i32_0 : i32, i32
  }
  func.func @transform_5(%arg0: i32) -> (i32, i32) {
    %c0_i32 = arith.constant 0 : i32
    %c0_i32_0 = arith.constant 0 : i32
    %c0_i32_1 = arith.constant 0 : i32
    return %c0_i32, %c0_i32_0 : i32, i32
  }
  func.func @transform_6(%arg0: i32) -> (i32, i32) {
    %c0_i32 = arith.constant 0 : i32
    %c0_i32_0 = arith.constant 0 : i32
    %c0_i32_1 = arith.constant 0 : i32
    return %c0_i32, %c0_i32_0 : i32, i32
  }
  func.func @transform_7(%arg0: i32) -> (i32, i32) {
    %c0_i32 = arith.constant 0 : i32
    %c0_i32_0 = arith.constant 0 : i32
    %c0_i32_1 = arith.constant 0 : i32
    return %c0_i32, %c0_i32_0 : i32, i32
  }
  func.func @transform_8(%arg0: i32) -> (i32, i32) {
    %c0_i32 = arith.constant 0 : i32
    %c0_i32_0 = arith.constant 0 : i32
    %c0_i32_1 = arith.constant 0 : i32
    return %c0_i32, %c0_i32_0 : i32, i32
  }
  func.func @transform_9(%arg0: i32) -> (i32, i32) {
    %c0_i32 = arith.constant 0 : i32
    %c0_i32_0 = arith.constant 0 : i32
    return %arg0, %c0_i32 : i32, i32
  }
  func.func @transform_10(%arg0: i32) -> (i32, i32) {
    %c0_i32 = arith.constant 0 : i32
    %c0_i32_0 = arith.constant 0 : i32
    return %arg0, %c0_i32 : i32, i32
  }
}

</mosaic_0001>

<llo_original>
// kernel: tpu_custom_call.1
$region0: #{tpu_custom_call.1}
  #allocation0 [shape = 'u32[]', space=smem, size = 0x4, offset = 0x4, fixed_abs, tag = 'smem constant byte address 0x4 - core index']
  #allocation1 [shape = 'u32[144,128]{1,0:T(1,128)}', space=vmem, size = 0x12000, scoped, tag = 'internal scratch']
  %s0 = inlined_call_operand.hbm [shape: bf16[8,256], index: 0, kind: input, shape index: {}]
  %s1 = inlined_call_operand.hbm [shape: bf16[256,128], index: 1, kind: input, shape index: {}]
  %s2 = inlined_call_operand.vmem [shape: f32[1,128], index: 2, kind: input, shape index: {}]
  %s3 = inlined_call_operand.hbm [shape: bf16[128,128], index: 3, kind: input, shape index: {}]
  %s4 = inlined_call_operand.vmem [shape: f32[1,128], index: 4, kind: input, shape index: {}]
  %s5 = inlined_call_operand.hbm [shape: bf16[128,128], index: 5, kind: input, shape index: {}]
  %s6 = inlined_call_operand.vmem [shape: f32[1,128], index: 6, kind: input, shape index: {}]
  %s7 = inlined_call_operand.hbm [shape: bf16[128,256], index: 7, kind: input, shape index: {}]
  %s8 = inlined_call_operand.vmem [shape: f32[1,256], index: 8, kind: input, shape index: {}]
  %s9 = inlined_call_operand.hbm [shape: bf16[8,256], index: 9, kind: output, shape index: {0}]
  %s10 = inlined_call_operand.hbm [shape: f32[8,128], index: 10, kind: output, shape index: {1}]
  %11 = xla_tuple %s9, %s10
  %s12 = sld [smem:[#allocation0]]
  $region74: #{tpu_custom_call.1} parent=0
    _
  %s14 = ssub.s32 1, %s12
  %s15 = scalar_select 0, %s14, %s12
  $region1: #{tpu_custom_call.1} parent=0
    #allocation2 [shape = 'u8[4096]{0}', space=vmem, size = 0x1000, scoped, tag = 'input window, operand 0, single buffered']
    #allocation3 [shape = 's32[1]{0}', space=sflag, size = 0x4, scoped, tag = 'scoped memory for tpu_custom_call.1']
    #allocation4 [shape = 's32[1]{0}', space=sflag, size = 0x4, scoped, tag = 'scoped memory for tpu_custom_call.1']
    #allocation5 [shape = 'u8[65536]{0}', space=vmem, size = 0x10000, scoped, tag = 'input window, operand 1, single buffered']
    #allocation6 [shape = 's32[1]{0}', space=sflag, size = 0x4, scoped, tag = 'scoped memory for tpu_custom_call.1']
    #allocation7 [shape = 'u8[32768]{0}', space=vmem, size = 0x8000, scoped, tag = 'input window, operand 3, single buffered']
    #allocation8 [shape = 'u8[32768]{0}', space=vmem, size = 0x8000, scoped, tag = 'input window, operand 5, single buffered']
    #allocation9 [shape = 's32[1]{0}', space=sflag, size = 0x4, scoped, tag = 'scoped memory for tpu_custom_call.1']
    #allocation10 [shape = 'u8[65536]{0}', space=vmem, size = 0x10000, scoped, tag = 'input window, operand 7, single buffered']
    #allocation11 [shape = 'u8[4096]{0}', space=vmem, size = 0x1000, scoped, tag = 'output window, operand 0, single buffered']
    #allocation12 [shape = 'u8[4096]{0}', space=vmem, size = 0x1000, scoped, tag = 'output window, operand 1, single buffered']
    #allocation13 [shape = 's32[1]{0}', space=sflag, size = 0x4, scoped, tag = 'scoped memory for tpu_custom_call.1']
    %16 = vsyncpa [#allocation3], 0
    %17 = vsyncpa [#allocation6], 0
    %18 = vsyncpa [#allocation9], 0
    %19 = vsyncpa [#allocation4], 0
    %20 = vsyncpa [#allocation13], 0
    // Predicated region
    $region2: #{tpu_custom_call.1} parent=1 // pred_check
      _
    $region3: #{tpu_custom_call.1} parent=1 // pred_check_branch
      %22 = sbr.rel (0) target = $region5
    $region4: #{tpu_custom_call.1} parent=1 // pred_region
      %s24 = ssub.s32 128, 128
      %25 = vsyncadd [#allocation3], %s24
      %s27 = sshll.u32 [#allocation2], 4
      %s28 = int_to_ptr.vmem [resolvable:$true] %s27
      %30 = dma.hbm_to_vmem [thread:$0]  %s0, 128, %s28, [#allocation3]
    $region5: #{tpu_custom_call.1} parent=1 // pred_fallthru
      _
    // Predicated region
    $region6: #{tpu_custom_call.1} parent=1 // pred_check
      _
    $region7: #{tpu_custom_call.1} parent=1 // pred_check_branch
      %32 = sbr.rel (0) target = $region9
    $region8: #{tpu_custom_call.1} parent=1 // pred_region
      %s34 = ssub.s32 2048, 2048
      %35 = vsyncadd [#allocation6], %s34
      %s36 = sshll.u32 [#allocation5], 4
      %s37 = int_to_ptr.vmem [resolvable:$true] %s36
      %42 = dma.hbm_to_vmem [thread:$0]  %s1, 2048, %s37, [#allocation6], 64, 64, 4
    $region9: #{tpu_custom_call.1} parent=1 // pred_fallthru
      _
    // Predicated region
    $region10: #{tpu_custom_call.1} parent=1 // pred_check
      _
    $region11: #{tpu_custom_call.1} parent=1 // pred_check_branch
      %44 = sbr.rel (0) target = $region13
    $region12: #{tpu_custom_call.1} parent=1 // pred_region
      _
    $region13: #{tpu_custom_call.1} parent=1 // pred_fallthru
      _
    // Predicated region
    $region14: #{tpu_custom_call.1} parent=1 // pred_check
      _
    $region15: #{tpu_custom_call.1} parent=1 // pred_check_branch
      %46 = sbr.rel (0) target = $region17
    $region16: #{tpu_custom_call.1} parent=1 // pred_region
      %s48 = ssub.s32 1024, 1024
      %49 = vsyncadd [#allocation6], %s48
      %s50 = sshll.u32 [#allocation7], 4
      %s51 = int_to_ptr.vmem [resolvable:$true] %s50
      %56 = dma.hbm_to_vmem [thread:$0]  %s3, 1024, %s51, [#allocation6], 64, 64, 4
    $region17: #{tpu_custom_call.1} parent=1 // pred_fallthru
      _
    // Predicated region
    $region18: #{tpu_custom_call.1} parent=1 // pred_check
      _
    $region19: #{tpu_custom_call.1} parent=1 // pred_check_branch
      %58 = sbr.rel (0) target = $region21
    $region20: #{tpu_custom_call.1} parent=1 // pred_region
      _
    $region21: #{tpu_custom_call.1} parent=1 // pred_fallthru
      _
    // Predicated region
    $region22: #{tpu_custom_call.1} parent=1 // pred_check
      _
    $region23: #{tpu_custom_call.1} parent=1 // pred_check_branch
      %60 = sbr.rel (0) target = $region25
    $region24: #{tpu_custom_call.1} parent=1 // pred_region
      %s62 = ssub.s32 1024, 1024
      %63 = vsyncadd [#allocation9], %s62
      %s64 = sshll.u32 [#allocation8], 4
      %s65 = int_to_ptr.vmem [resolvable:$true] %s64
      %70 = dma.hbm_to_vmem [thread:$0]  %s5, 1024, %s65, [#allocation9], 64, 64, 4
    $region25: #{tpu_custom_call.1} parent=1 // pred_fallthru
      _
    // Predicated region
    $region26: #{tpu_custom_call.1} parent=1 // pred_check
      _
    $region27: #{tpu_custom_call.1} parent=1 // pred_check_branch
      %72 = sbr.rel (0) target = $region29
    $region28: #{tpu_custom_call.1} parent=1 // pred_region
      _
    $region29: #{tpu_custom_call.1} parent=1 // pred_fallthru
      _
    // Predicated region
    $region30: #{tpu_custom_call.1} parent=1 // pred_check
      _
    $region31: #{tpu_custom_call.1} parent=1 // pred_check_branch
      %74 = sbr.rel (0) target = $region33
    $region32: #{tpu_custom_call.1} parent=1 // pred_region
      %s76 = ssub.s32 2048, 2048
      %77 = vsyncadd [#allocation9], %s76
      %s78 = sshll.u32 [#allocation10], 4
      %s79 = int_to_ptr.vmem [resolvable:$true] %s78
      %84 = dma.hbm_to_vmem [thread:$0]  %s7, 2048, %s79, [#allocation9], 128, 128, 8
    $region33: #{tpu_custom_call.1} parent=1 // pred_fallthru
      _
    // Predicated region
    $region34: #{tpu_custom_call.1} parent=1 // pred_check
      _
    $region35: #{tpu_custom_call.1} parent=1 // pred_check_branch
      %86 = sbr.rel (0) target = $region37
    $region36: #{tpu_custom_call.1} parent=1 // pred_region
      _
    $region37: #{tpu_custom_call.1} parent=1 // pred_fallthru
      _
    // Predicated region
    $region38: #{tpu_custom_call.1} parent=1 // pred_check
      _
    $region39: #{tpu_custom_call.1} parent=1 // pred_check_branch
      %88 = sbr.rel (0) target = $region41
    $region40: #{tpu_custom_call.1} parent=1 // pred_region
      %89 = dma.done [#allocation3], 128
    $region41: #{tpu_custom_call.1} parent=1 // pred_fallthru
      _
    // Predicated region
    $region42: #{tpu_custom_call.1} parent=1 // pred_check
      _
    $region43: #{tpu_custom_call.1} parent=1 // pred_check_branch
      %91 = sbr.rel (0) target = $region45
    $region44: #{tpu_custom_call.1} parent=1 // pred_region
      %92 = dma.done [#allocation6], 2048
    $region45: #{tpu_custom_call.1} parent=1 // pred_fallthru
      _
    // Predicated region
    $region46: #{tpu_custom_call.1} parent=1 // pred_check
      _
    $region47: #{tpu_custom_call.1} parent=1 // pred_check_branch
      %94 = sbr.rel (0) target = $region49
    $region48: #{tpu_custom_call.1} parent=1 // pred_region
      %95 = dma.done [#allocation6], 1024
    $region49: #{tpu_custom_call.1} parent=1 // pred_fallthru
      _
    // Predicated region
    $region50: #{tpu_custom_call.1} parent=1 // pred_check
      _
    $region51: #{tpu_custom_call.1} parent=1 // pred_check_branch
      %97 = sbr.rel (0) target = $region53
    $region52: #{tpu_custom_call.1} parent=1 // pred_region
      %98 = dma.done [#allocation9], 1024
    $region53: #{tpu_custom_call.1} parent=1 // pred_fallthru
      _
    // Predicated region
    $region54: #{tpu_custom_call.1} parent=1 // pred_check
      _
    $region55: #{tpu_custom_call.1} parent=1 // pred_check_branch
      %100 = sbr.rel (0) target = $region57
    $region56: #{tpu_custom_call.1} parent=1 // pred_region
      %101 = dma.done [#allocation9], 2048
    $region57: #{tpu_custom_call.1} parent=1 // pred_fallthru
      _
    %v103 = vld [vmem:[#allocation2] sm:$0xff]
    %v104 = vld [vmem:[#allocation5] sm:$0xf]
    %v105 = vld [vmem:[#allocation5 + $0x4] sm:$0xf]
    %v106 = vld [vmem:[#allocation5 + $0x8] sm:$0xf]
    %v107 = vld [vmem:[#allocation5 + $0xc] sm:$0xf]
    %v108 = vld [vmem:[#allocation5 + $0x10] sm:$0xf]
    %v109 = vld [vmem:[#allocation5 + $0x14] sm:$0xf]
    %v110 = vld [vmem:[#allocation5 + $0x18] sm:$0xf]
    %v111 = vld [vmem:[#allocation5 + $0x1c] sm:$0xf]
    %v112 = vld [vmem:[#allocation5 + $0x20] sm:$0xf]
    %v113 = vld [vmem:[#allocation5 + $0x24] sm:$0xf]
    %v114 = vld [vmem:[#allocation5 + $0x28] sm:$0xf]
    %v115 = vld [vmem:[#allocation5 + $0x2c] sm:$0xf]
    %v116 = vld [vmem:[#allocation5 + $0x30] sm:$0xf]
    %v117 = vld [vmem:[#allocation5 + $0x34] sm:$0xf]
    %v118 = vld [vmem:[#allocation5 + $0x38] sm:$0xf]
    %v119 = vld [vmem:[#allocation5 + $0x3c] sm:$0xf]
    %v120 = vld [vmem:[#allocation5 + $0x40] sm:$0xf]
    %v121 = vld [vmem:[#allocation5 + $0x44] sm:$0xf]
    %v122 = vld [vmem:[#allocation5 + $0x48] sm:$0xf]
    %v123 = vld [vmem:[#allocation5 + $0x4c] sm:$0xf]
    %v124 = vld [vmem:[#allocation5 + $0x50] sm:$0xf]
    %v125 = vld [vmem:[#allocation5 + $0x54] sm:$0xf]
    %v126 = vld [vmem:[#allocation5 + $0x58] sm:$0xf]
    %v127 = vld [vmem:[#allocation5 + $0x5c] sm:$0xf]
    %v128 = vld [vmem:[#allocation5 + $0x60] sm:$0xf]
    %v129 = vld [vmem:[#allocation5 + $0x64] sm:$0xf]
    %v130 = vld [vmem:[#allocation5 + $0x68] sm:$0xf]
    %v131 = vld [vmem:[#allocation5 + $0x6c] sm:$0xf]
    %v132 = vld [vmem:[#allocation5 + $0x70] sm:$0xf]
    %v133 = vld [vmem:[#allocation5 + $0x74] sm:$0xf]
    %v134 = vld [vmem:[#allocation5 + $0x78] sm:$0xf]
    %v135 = vld [vmem:[#allocation5 + $0x7c] sm:$0xf]
    %v136 = vld [vmem:[%s2] sm:$0x1]
    %v138 = vlaneseq
    %v139 = vshrl.u32 %v138, 7
    %v140 = vsub.s32 0, %v139
    %v141 = vrot.slane %v136, %v140
    %v144 = vunpack.c.l.b16 %v103
    %v145 = vunpack.c.h.b16 %v103
    %v146 = vpack.c.b16 %v144, %v144
    %v147 = vpack.c.b16 %v145, %v145
    %v182 = vunpack.c.l.b16 %v104
    %v183 = vunpack.c.l.b16 %v105
    %v184 = vunpack.c.l.b16 %v106
    %v185 = vunpack.c.l.b16 %v107
    %v186 = vunpack.c.l.b16 %v108
    %v187 = vunpack.c.l.b16 %v109
    %v188 = vunpack.c.l.b16 %v110
    %v189 = vunpack.c.l.b16 %v111
    %v190 = vunpack.c.l.b16 %v112
    %v191 = vunpack.c.l.b16 %v113
    %v192 = vunpack.c.l.b16 %v114
    %v193 = vunpack.c.l.b16 %v115
    %v194 = vunpack.c.l.b16 %v116
    %v195 = vunpack.c.l.b16 %v117
    %v196 = vunpack.c.l.b16 %v118
    %v197 = vunpack.c.l.b16 %v119
    %v198 = vunpack.c.l.b16 %v120
    %v199 = vunpack.c.l.b16 %v121
    %v200 = vunpack.c.l.b16 %v122
    %v201 = vunpack.c.l.b16 %v123
    %v202 = vunpack.c.l.b16 %v124
    %v203 = vunpack.c.l.b16 %v125
    %v204 = vunpack.c.l.b16 %v126
    %v205 = vunpack.c.l.b16 %v127
    %v206 = vunpack.c.l.b16 %v128
    %v207 = vunpack.c.l.b16 %v129
    %v208 = vunpack.c.l.b16 %v130
    %v209 = vunpack.c.l.b16 %v131
    %v210 = vunpack.c.l.b16 %v132
    %v211 = vunpack.c.l.b16 %v133
    %v212 = vunpack.c.l.b16 %v134
    %v213 = vunpack.c.l.b16 %v135
    %v214 = vpack.c.b16 %v183, %v182
    %v215 = vpack.c.b16 %v185, %v184
    %v216 = vpack.c.b16 %v187, %v186
    %v217 = vpack.c.b16 %v189, %v188
    %v218 = vpack.c.b16 %v191, %v190
    %v219 = vpack.c.b16 %v193, %v192
    %v220 = vpack.c.b16 %v195, %v194
    %v221 = vpack.c.b16 %v197, %v196
    %v222 = vpack.c.b16 %v199, %v198
    %v223 = vpack.c.b16 %v201, %v200
    %v224 = vpack.c.b16 %v203, %v202
    %v225 = vpack.c.b16 %v205, %v204
    %v226 = vpack.c.b16 %v207, %v206
    %v227 = vpack.c.b16 %v209, %v208
    %v228 = vpack.c.b16 %v211, %v210
    %v229 = vpack.c.b16 %v213, %v212
    %246 = vmatprep.subr.bf16.mxu0 0
    %247 = vmatpush1.bf16.msra.mxu0 %v214
    %248 = vmatprep.subr.bf16.mxu0 0
    %249 = vmatpush1.bf16.msra.mxu0 %v215
    %250 = vmatprep.subr.bf16.mxu0 0
    %251 = vmatpush1.bf16.msra.mxu0 %v216
    %252 = vmatprep.subr.bf16.mxu0 0
    %253 = vmatpush1.bf16.msra.mxu0 %v217
    %254 = vmatprep.subr.bf16.mxu0 0
    %255 = vmatpush1.bf16.msra.mxu0 %v218
    %256 = vmatprep.subr.bf16.mxu0 0
    %257 = vmatpush1.bf16.msra.mxu0 %v219
    %258 = vmatprep.subr.bf16.mxu0 0
    %259 = vmatpush1.bf16.msra.mxu0 %v220
    %260 = vmatprep.subr.bf16.mxu0 0
    %261 = vmatpush1.bf16.msra.mxu0 %v221
    %262 = vmatprep.subr.bf16.mxu0 0
    %263 = vmatpush1.bf16.msra.mxu0 %v222
    %264 = vmatprep.subr.bf16.mxu0 0
    %265 = vmatpush1.bf16.msra.mxu0 %v223
    %266 = vmatprep.subr.bf16.mxu0 0
    %267 = vmatpush1.bf16.msra.mxu0 %v224
    %268 = vmatprep.subr.bf16.mxu0 0
    %269 = vmatpush1.bf16.msra.mxu0 %v225
    %270 = vmatprep.subr.bf16.mxu0 0
    %271 = vmatpush1.bf16.msra.mxu0 %v226
    %272 = vmatprep.subr.bf16.mxu0 0
    %273 = vmatpush1.bf16.msra.mxu0 %v227
    %274 = vmatprep.subr.bf16.mxu0 0
    %275 = vmatpush1.bf16.msra.mxu0 %v228
    %276 = vmatprep.subr.bf16.mxu0 0
    %277 = vmatpush1.bf16.msra.mxu0 %v229
    %278 = vmatprep.mubr.bf16.mxu0 %v147
    %279 = vmatmul.mubr.bf16.gmra.mrb[0].mxu0 %v146
    %v280 = vpop.f32.mrb[0].mxu0
    %v281 = vadd.f32 %v141, %v280
    %v282 = vpop.f32.mrb[0].mxu0
    %v283 = vpop.f32.mrb[0].mxu0
    %v284 = vpop.f32.mrb[0].mxu0
    %285 = vdwg.mxu0
    %v286 = vmax.f32 %v281, 0.0
    %v287 = vpack.c.bf16 %v286, %v286
    %v288 = vld [vmem:[#allocation7] sm:$0xf]
    %v289 = vld [vmem:[#allocation7 + $0x4] sm:$0xf]
    %v290 = vld [vmem:[#allocation7 + $0x8] sm:$0xf]
    %v291 = vld [vmem:[#allocation7 + $0xc] sm:$0xf]
    %v292 = vld [vmem:[#allocation7 + $0x10] sm:$0xf]
    %v293 = vld [vmem:[#allocation7 + $0x14] sm:$0xf]
    %v294 = vld [vmem:[#allocation7 + $0x18] sm:$0xf]
    %v295 = vld [vmem:[#allocation7 + $0x1c] sm:$0xf]
    %v296 = vld [vmem:[#allocation7 + $0x20] sm:$0xf]
    %v297 = vld [vmem:[#allocation7 + $0x24] sm:$0xf]
    %v298 = vld [vmem:[#allocation7 + $0x28] sm:$0xf]
    %v299 = vld [vmem:[#allocation7 + $0x2c] sm:$0xf]
    %v300 = vld [vmem:[#allocation7 + $0x30] sm:$0xf]
    %v301 = vld [vmem:[#allocation7 + $0x34] sm:$0xf]
    %v302 = vld [vmem:[#allocation7 + $0x38] sm:$0xf]
    %v303 = vld [vmem:[#allocation7 + $0x3c] sm:$0xf]
    %v304 = vld [vmem:[%s4] sm:$0x1]
    %v306 = vlaneseq
    %v307 = vshrl.u32 %v306, 7
    %v308 = vsub.s32 0, %v307
    %v309 = vrot.slane %v304, %v308
    %v327 = vunpack.c.l.b16 %v288
    %v328 = vunpack.c.l.b16 %v289
    %v329 = vunpack.c.l.b16 %v290
    %v330 = vunpack.c.l.b16 %v291
    %v331 = vunpack.c.l.b16 %v292
    %v332 = vunpack.c.l.b16 %v293
    %v333 = vunpack.c.l.b16 %v294
    %v334 = vunpack.c.l.b16 %v295
    %v335 = vunpack.c.l.b16 %v296
    %v336 = vunpack.c.l.b16 %v297
    %v337 = vunpack.c.l.b16 %v298
    %v338 = vunpack.c.l.b16 %v299
    %v339 = vunpack.c.l.b16 %v300
    %v340 = vunpack.c.l.b16 %v301
    %v341 = vunpack.c.l.b16 %v302
    %v342 = vunpack.c.l.b16 %v303
    %v343 = vpack.c.b16 %v328, %v327
    %v344 = vpack.c.b16 %v330, %v329
    %v345 = vpack.c.b16 %v332, %v331
    %v346 = vpack.c.b16 %v334, %v333
    %v347 = vpack.c.b16 %v336, %v335
    %v348 = vpack.c.b16 %v338, %v337
    %v349 = vpack.c.b16 %v340, %v339
    %v350 = vpack.c.b16 %v342, %v341
    %359 = vmatprep.subr.bf16.mxu0 0
    %360 = vmatpush1.bf16.msra.mxu0 %v343
    %361 = vmatprep.subr.bf16.mxu0 0
    %362 = vmatpush1.bf16.msra.mxu0 %v344
    %363 = vmatprep.subr.bf16.mxu0 0
    %364 = vmatpush1.bf16.msra.mxu0 %v345
    %365 = vmatprep.subr.bf16.mxu0 0
    %366 = vmatpush1.bf16.msra.mxu0 %v346
    %367 = vmatprep.subr.bf16.mxu0 0
    %368 = vmatpush1.bf16.msra.mxu0 %v347
    %369 = vmatprep.subr.bf16.mxu0 0
    %370 = vmatpush1.bf16.msra.mxu0 %v348
    %371 = vmatprep.subr.bf16.mxu0 0
    %372 = vmatpush1.bf16.msra.mxu0 %v349
    %373 = vmatprep.subr.bf16.mxu0 0
    %374 = vmatpush1.bf16.msra.mxu0 %v350
    %375 = vmatprep.subr.bf16.mxu0 0
    %376 = vmatpush1.bf16.msra.mxu0 0
    %377 = vmatprep.subr.bf16.mxu0 0
    %378 = vmatpush1.bf16.msra.mxu0 0
    %379 = vmatprep.subr.bf16.mxu0 0
    %380 = vmatpush1.bf16.msra.mxu0 0
    %381 = vmatprep.subr.bf16.mxu0 0
    %382 = vmatpush1.bf16.msra.mxu0 0
    %383 = vmatprep.subr.bf16.mxu0 0
    %384 = vmatpush1.bf16.msra.mxu0 0
    %385 = vmatprep.subr.bf16.mxu0 0
    %386 = vmatpush1.bf16.msra.mxu0 0
    %387 = vmatprep.subr.bf16.mxu0 0
    %388 = vmatpush1.bf16.msra.mxu0 0
    %389 = vmatprep.subr.bf16.mxu0 0
    %390 = vmatpush1.bf16.msra.mxu0 0
    %391 = vmatprep.mubr.bf16.mxu0 0
    %392 = vmatmul.mubr.bf16.gmra.mrb[0].mxu0 %v287
    %v393 = vpop.f32.mrb[0].mxu0
    %v394 = vadd.f32 %v309, %v393
    %v395 = vpop.f32.mrb[0].mxu0
    %v396 = vpop.f32.mrb[0].mxu0
    %v397 = vpop.f32.mrb[0].mxu0
    %398 = vdwg.mxu0
    %399 = vst [vmem:[#allocation12] sm:$0xff] %v394
    %v400 = vpack.c.bf16 %v394, %v394
    %v401 = vld [vmem:[#allocation8] sm:$0xf]
    %v402 = vld [vmem:[#allocation8 + $0x4] sm:$0xf]
    %v403 = vld [vmem:[#allocation8 + $0x8] sm:$0xf]
    %v404 = vld [vmem:[#allocation8 + $0xc] sm:$0xf]
    %v405 = vld [vmem:[#allocation8 + $0x10] sm:$0xf]
    %v406 = vld [vmem:[#allocation8 + $0x14] sm:$0xf]
    %v407 = vld [vmem:[#allocation8 + $0x18] sm:$0xf]
    %v408 = vld [vmem:[#allocation8 + $0x1c] sm:$0xf]
    %v409 = vld [vmem:[#allocation8 + $0x20] sm:$0xf]
    %v410 = vld [vmem:[#allocation8 + $0x24] sm:$0xf]
    %v411 = vld [vmem:[#allocation8 + $0x28] sm:$0xf]
    %v412 = vld [vmem:[#allocation8 + $0x2c] sm:$0xf]
    %v413 = vld [vmem:[#allocation8 + $0x30] sm:$0xf]
    %v414 = vld [vmem:[#allocation8 + $0x34] sm:$0xf]
    %v415 = vld [vmem:[#allocation8 + $0x38] sm:$0xf]
    %v416 = vld [vmem:[#allocation8 + $0x3c] sm:$0xf]
    %v417 = vld [vmem:[%s6] sm:$0x1]
    %v419 = vlaneseq
    %v420 = vshrl.u32 %v419, 7
    %v421 = vsub.s32 0, %v420
    %v422 = vrot.slane %v417, %v421
    %v440 = vunpack.c.l.b16 %v401
    %v441 = vunpack.c.l.b16 %v402
    %v442 = vunpack.c.l.b16 %v403
    %v443 = vunpack.c.l.b16 %v404
    %v444 = vunpack.c.l.b16 %v405
    %v445 = vunpack.c.l.b16 %v406
    %v446 = vunpack.c.l.b16 %v407
    %v447 = vunpack.c.l.b16 %v408
    %v448 = vunpack.c.l.b16 %v409
    %v449 = vunpack.c.l.b16 %v410
    %v450 = vunpack.c.l.b16 %v411
    %v451 = vunpack.c.l.b16 %v412
    %v452 = vunpack.c.l.b16 %v413
    %v453 = vunpack.c.l.b16 %v414
    %v454 = vunpack.c.l.b16 %v415
    %v455 = vunpack.c.l.b16 %v416
    %v456 = vpack.c.b16 %v441, %v440
    %v457 = vpack.c.b16 %v443, %v442
    %v458 = vpack.c.b16 %v445, %v444
    %v459 = vpack.c.b16 %v447, %v446
    %v460 = vpack.c.b16 %v449, %v448
    %v461 = vpack.c.b16 %v451, %v450
    %v462 = vpack.c.b16 %v453, %v452
    %v463 = vpack.c.b16 %v455, %v454
    %472 = vmatprep.subr.bf16.mxu0 0
    %473 = vmatpush1.bf16.msra.mxu0 %v456
    %474 = vmatprep.subr.bf16.mxu0 0
    %475 = vmatpush1.bf16.msra.mxu0 %v457
    %476 = vmatprep.subr.bf16.mxu0 0
    %477 = vmatpush1.bf16.msra.mxu0 %v458
    %478 = vmatprep.subr.bf16.mxu0 0
    %479 = vmatpush1.bf16.msra.mxu0 %v459
    %480 = vmatprep.subr.bf16.mxu0 0
    %481 = vmatpush1.bf16.msra.mxu0 %v460
    %482 = vmatprep.subr.bf16.mxu0 0
    %483 = vmatpush1.bf16.msra.mxu0 %v461
    %484 = vmatprep.subr.bf16.mxu0 0
    %485 = vmatpush1.bf16.msra.mxu0 %v462
    %486 = vmatprep.subr.bf16.mxu0 0
    %487 = vmatpush1.bf16.msra.mxu0 %v463
    %488 = vmatprep.subr.bf16.mxu0 0
    %489 = vmatpush1.bf16.msra.mxu0 0
    %490 = vmatprep.subr.bf16.mxu0 0
    %491 = vmatpush1.bf16.msra.mxu0 0
    %492 = vmatprep.subr.bf16.mxu0 0
    %493 = vmatpush1.bf16.msra.mxu0 0
    %494 = vmatprep.subr.bf16.mxu0 0
    %495 = vmatpush1.bf16.msra.mxu0 0
    %496 = vmatprep.subr.bf16.mxu0 0
    %497 = vmatpush1.bf16.msra.mxu0 0
    %498 = vmatprep.subr.bf16.mxu0 0
    %499 = vmatpush1.bf16.msra.mxu0 0
    %500 = vmatprep.subr.bf16.mxu0 0
    %501 = vmatpush1.bf16.msra.mxu0 0
    %502 = vmatprep.subr.bf16.mxu0 0
    %503 = vmatpush1.bf16.msra.mxu0 0
    %504 = vmatprep.mubr.bf16.mxu0 0
    %505 = vmatmul.mubr.bf16.gmra.mrb[0].mxu0 %v400
    %v506 = vpop.f32.mrb[0].mxu0
    %v507 = vadd.f32 %v422, %v506
    %v508 = vpop.f32.mrb[0].mxu0
    %v509 = vpop.f32.mrb[0].mxu0
    %v510 = vpop.f32.mrb[0].mxu0
    %511 = vdwg.mxu0
    %v512 = vmax.f32 %v507, 0.0
    %v513 = vpack.c.bf16 %v512, %v512
    %v514 = vld [vmem:[#allocation10] sm:$0xff]
    %v515 = vld [vmem:[#allocation10 + $0x8] sm:$0xff]
    %v516 = vld [vmem:[#allocation10 + $0x10] sm:$0xff]
    %v517 = vld [vmem:[#allocation10 + $0x18] sm:$0xff]
    %v518 = vld [vmem:[#allocation10 + $0x20] sm:$0xff]
    %v519 = vld [vmem:[#allocation10 + $0x28] sm:$0xff]
    %v520 = vld [vmem:[#allocation10 + $0x30] sm:$0xff]
    %v521 = vld [vmem:[#allocation10 + $0x38] sm:$0xff]
    %v522 = vld [vmem:[#allocation10 + $0x40] sm:$0xff]
    %v523 = vld [vmem:[#allocation10 + $0x48] sm:$0xff]
    %v524 = vld [vmem:[#allocation10 + $0x50] sm:$0xff]
    %v525 = vld [vmem:[#allocation10 + $0x58] sm:$0xff]
    %v526 = vld [vmem:[#allocation10 + $0x60] sm:$0xff]
    %v527 = vld [vmem:[#allocation10 + $0x68] sm:$0xff]
    %v528 = vld [vmem:[#allocation10 + $0x70] sm:$0xff]
    %v529 = vld [vmem:[#allocation10 + $0x78] sm:$0xff]
    %v530 = vld [vmem:[%s8] sm:$0x3]
    %v532 = vlaneseq
    %v533 = vshrl.u32 %v532, 7
    %v534 = vsub.s32 0, %v533
    %v535 = vrot.slane %v530, %v534
    %v536 = vlaneseq
    %v537 = vshrl.u32 %v536, 7
    %v538 = vsub.s32 1, %v537
    %v539 = vrot.slane %v530, %v538
    %v558 = vunpack.c.l.b16 %v514
    %v559 = vunpack.c.h.b16 %v514
    %v560 = vunpack.c.l.b16 %v515
    %v561 = vunpack.c.h.b16 %v515
    %v562 = vunpack.c.l.b16 %v516
    %v563 = vunpack.c.h.b16 %v516
    %v564 = vunpack.c.l.b16 %v517
    %v565 = vunpack.c.h.b16 %v517
    %v566 = vunpack.c.l.b16 %v518
    %v567 = vunpack.c.h.b16 %v518
    %v568 = vunpack.c.l.b16 %v519
    %v569 = vunpack.c.h.b16 %v519
    %v570 = vunpack.c.l.b16 %v520
    %v571 = vunpack.c.h.b16 %v520
    %v572 = vunpack.c.l.b16 %v521
    %v573 = vunpack.c.h.b16 %v521
    %v574 = vunpack.c.l.b16 %v522
    %v575 = vunpack.c.h.b16 %v522
    %v576 = vunpack.c.l.b16 %v523
    %v577 = vunpack.c.h.b16 %v523
    %v578 = vunpack.c.l.b16 %v524
    %v579 = vunpack.c.h.b16 %v524
    %v580 = vunpack.c.l.b16 %v525
    %v581 = vunpack.c.h.b16 %v525
    %v582 = vunpack.c.l.b16 %v526
    %v583 = vunpack.c.h.b16 %v526
    %v584 = vunpack.c.l.b16 %v527
    %v585 = vunpack.c.h.b16 %v527
    %v586 = vunpack.c.l.b16 %v528
    %v587 = vunpack.c.h.b16 %v528
    %v588 = vunpack.c.l.b16 %v529
    %v589 = vunpack.c.h.b16 %v529
    %v590 = vpack.c.b16 %v560, %v558
    %v591 = vpack.c.b16 %v561, %v559
    %v592 = vpack.c.b16 %v564, %v562
    %v593 = vpack.c.b16 %v565, %v563
    %v594 = vpack.c.b16 %v568, %v566
    %v595 = vpack.c.b16 %v569, %v567
    %v596 = vpack.c.b16 %v572, %v570
    %v597 = vpack.c.b16 %v573, %v571
    %v598 = vpack.c.b16 %v576, %v574
    %v599 = vpack.c.b16 %v577, %v575
    %v600 = vpack.c.b16 %v580, %v578
    %v601 = vpack.c.b16 %v581, %v579
    %v602 = vpack.c.b16 %v584, %v582
    %v603 = vpack.c.b16 %v585, %v583
    %v604 = vpack.c.b16 %v588, %v586
    %v605 = vpack.c.b16 %v589, %v587
    %622 = vmatprep.subr.bf16.mxu0 %v591
    %623 = vmatpush1.bf16.msra.mxu0 %v590
    %624 = vmatprep.subr.bf16.mxu0 %v593
    %625 = vmatpush1.bf16.msra.mxu0 %v592
    %626 = vmatprep.subr.bf16.mxu0 %v595
    %627 = vmatpush1.bf16.msra.mxu0 %v594
    %628 = vmatprep.subr.bf16.mxu0 %v597
    %629 = vmatpush1.bf16.msra.mxu0 %v596
    %630 = vmatprep.subr.bf16.mxu0 %v599
    %631 = vmatpush1.bf16.msra.mxu0 %v598
    %632 = vmatprep.subr.bf16.mxu0 %v601
    %633 = vmatpush1.bf16.msra.mxu0 %v600
    %634 = vmatprep.subr.bf16.mxu0 %v603
    %635 = vmatpush1.bf16.msra.mxu0 %v602
    %636 = vmatprep.subr.bf16.mxu0 %v605
    %637 = vmatpush1.bf16.msra.mxu0 %v604
    %638 = vmatprep.subr.bf16.mxu0 0
    %639 = vmatpush1.bf16.msra.mxu0 0
    %640 = vmatprep.subr.bf16.mxu0 0
    %641 = vmatpush1.bf16.msra.mxu0 0
    %642 = vmatprep.subr.bf16.mxu0 0
    %643 = vmatpush1.bf16.msra.mxu0 0
    %644 = vmatprep.subr.bf16.mxu0 0
    %645 = vmatpush1.bf16.msra.mxu0 0
    %646 = vmatprep.subr.bf16.mxu0 0
    %647 = vmatpush1.bf16.msra.mxu0 0
    %648 = vmatprep.subr.bf16.mxu0 0
    %649 = vmatpush1.bf16.msra.mxu0 0
    %650 = vmatprep.subr.bf16.mxu0 0
    %651 = vmatpush1.bf16.msra.mxu0 0
    %652 = vmatprep.subr.bf16.mxu0 0
    %653 = vmatpush1.bf16.msra.mxu0 0
    %654 = vmatprep.mubr.bf16.mxu0 0
    %655 = vmatmul.mubr.bf16.gmra.mrb[0].mxu0 %v513
    %v656 = vpop.f32.mrb[0].mxu0
    %v657 = vadd.f32 %v535, %v656
    %v658 = vpop.f32.mrb[0].mxu0
    %v659 = vadd.f32 %v539, %v658
    %v660 = vpop.f32.mrb[0].mxu0
    %v661 = vpop.f32.mrb[0].mxu0
    %662 = vdwg.mxu0
    %v663 = vxor.u32 %v657, 2147483648
    %v664 = vxor.u32 %v659, 2147483648
    %v665 = vmul.f32 %v663, 1.442695
    %v666 = vpow.pop %v665
    %v667 = vmul.f32 %v664, 1.442695
    %v668 = vpow.pop %v667
    %v669 = vadd.f32 %v666, 1.0
    %v670 = vadd.f32 %v668, 1.0
    %v671 = vrcp.pop %v669
    %v672 = vmul.f32 1.0, %v671
    %v673 = vrcp.pop %v670
    %v674 = vmul.f32 1.0, %v673
    %v675 = vpack.c.bf16 %v672, %v672
    %v676 = vpack.c.bf16 %v674, %v674
    %v679 = vunpack.c.l.b16 %v675
    %v680 = vunpack.c.l.b16 %v676
    %v681 = vpack.c.b16 %v680, %v679
    %683 = vst [vmem:[#allocation11] sm:$0xff] %v681
    // Predicated region
    $region58: #{tpu_custom_call.1} parent=1 // pred_check
      _
    $region59: #{tpu_custom_call.1} parent=1 // pred_check_branch
      %685 = sbr.rel (0) target = $region61
    $region60: #{tpu_custom_call.1} parent=1 // pred_region
      %s687 = ssub.s32 128, 128
      %688 = vsyncadd [#allocation4], %s687
      %s690 = sshll.u32 [#allocation11], 4
      %s691 = int_to_ptr.vmem [resolvable:$true] %s690
      %693 = dma.vmem_to_hbm [thread:$0]  %s691, 128, %s9, [#allocation4]
    $region61: #{tpu_custom_call.1} parent=1 // pred_fallthru
      _
    // Predicated region
    $region62: #{tpu_custom_call.1} parent=1 // pred_check
      _
    $region63: #{tpu_custom_call.1} parent=1 // pred_check_branch
      %695 = sbr.rel (0) target = $region65
    $region64: #{tpu_custom_call.1} parent=1 // pred_region
      %s697 = ssub.s32 128, 128
      %698 = vsyncadd [#allocation13], %s697
      %s700 = sshll.u32 [#allocation12], 4
      %s701 = int_to_ptr.vmem [resolvable:$true] %s700
      %703 = dma.vmem_to_hbm [thread:$0]  %s701, 128, %s10, [#allocation13]
    $region65: #{tpu_custom_call.1} parent=1 // pred_fallthru
      _
    // Predicated region
    $region66: #{tpu_custom_call.1} parent=1 // pred_check
      _
    $region67: #{tpu_custom_call.1} parent=1 // pred_check_branch
      %705 = sbr.rel (0) target = $region69
    $region68: #{tpu_custom_call.1} parent=1 // pred_region
      %706 = dma.done [#allocation4], 128
    $region69: #{tpu_custom_call.1} parent=1 // pred_fallthru
      _
    // Predicated region
    $region70: #{tpu_custom_call.1} parent=1 // pred_check
      _
    $region71: #{tpu_custom_call.1} parent=1 // pred_check_branch
      %708 = sbr.rel (0) target = $region73
    $region72: #{tpu_custom_call.1} parent=1 // pred_region
      %709 = dma.done [#allocation13], 128
    $region73: #{tpu_custom_call.1} parent=1 // pred_fallthru
      _
    %710 = vsyncpa [#allocation3], 1
    %711 = vsyncpa [#allocation6], 1
    %712 = vsyncpa [#allocation9], 1
    %713 = vsyncpa [#allocation4], 1
    %714 = vsyncpa [#allocation13], 1

</llo_original>
